<compile_context>
chip_gen: v7x
topology: tpu7x:2x2x1
jax: 0.10.0
libtpu: 0.0.40
codegen_flags: <defaults>
</compile_context>

<pallas_src>
import functools

import jax
import jax.numpy as jnp
from jax.experimental import pallas as pl
from jax.experimental.pallas import tpu as pltpu


def _round_up(x, m):
    return ((x + m - 1) // m) * m


def _pad2d(a, rows, cols):
    return jnp.pad(a, ((0, rows - a.shape[0]), (0, cols - a.shape[1])))


def _vmem_limit_bytes():
    # ~96 MiB on v5e/v6e (128 MiB physical), ~48 MiB on v7x (64 MiB physical).
    cap = 64 * 1024 * 1024
    try:
        cap = int(pltpu.get_tpu_info().vmem_capacity_bytes)
    except Exception:
        pass
    return min(cap * 3 // 4, 96 * 1024 * 1024)


def _pick_tile_ent(k_pad, d_pad, b_rows_hint, mxu_bytes, vmem_limit):
    """Largest 128-multiple entity tile whose buffers fit the VMEM budget."""
    budget = int(vmem_limit * 0.6)          # headroom for compiler scratch
    tk = k_pad if k_pad <= 512 else 512
    for te in (2048, 1024, 512, 256, 128):
        need = (2 * te * tk * mxu_bytes          # entity tile (double-buffered)
                + 2 * tk * d_pad * mxu_bytes     # W tile (double-buffered)
                + b_rows_hint * d_pad * 4        # resident obj
                + 2 * b_rows_hint * te * 4       # output tile (double-buffered)
                + te * d_pad * 4)                # f32 accumulator scratch
        if need <= budget:
            return te
    return 128


def _pick_tile_batch(b_pad, n_pad, d_pad, neg_bytes, vmem_limit):
    budget = int(vmem_limit * 0.6)
    for tb in (128, 64, 32, 16):
        if tb <= b_pad and b_pad % tb == 0:
            need = (2 * tb * n_pad * d_pad * neg_bytes
                    + 2 * tb * d_pad * 4
                    + 2 * tb * n_pad * 4)
            if need <= budget:
                return tb
    return 16


# ---------------------------------------------------------------------------
# Pallas kernels
# ---------------------------------------------------------------------------
def _encode_rows_kernel(emb_ref, w_ref, b_ref, x_ref, acc_ref, *, mxu_dtype):
    # x = relu(emb @ W + b), K-tiled: accumulate in f32 scratch, finish at last k.
    k = pl.program_id(1)

    @pl.when(k == 0)
    def _():
        acc_ref[...] = jnp.zeros_like(acc_ref)

    acc_ref[...] += jnp.dot(emb_ref[...].astype(mxu_dtype),
                            w_ref[...].astype(mxu_dtype),
                            preferred_element_type=jnp.float32)

    @pl.when(k == pl.num_programs(1) - 1)
    def _():
        x_ref[...] = jnp.maximum(acc_ref[...] + b_ref[...], 0.0)


def _fused_score_all_kernel(emb_ref, w_ref, b_ref, obj_ref, out_ref, acc_ref,
                            *, mxu_dtype):
    # Encoder fused into the all-entity scoring pass (x never hits HBM),
    # K-tiled with an f32 accumulator for the entity tile's pre-activation.
    k = pl.program_id(1)

    @pl.when(k == 0)
    def _():
        acc_ref[...] = jnp.zeros_like(acc_ref)

    acc_ref[...] += jnp.dot(emb_ref[...].astype(mxu_dtype),
                            w_ref[...].astype(mxu_dtype),
                            preferred_element_type=jnp.float32)

    @pl.when(k == pl.num_programs(1) - 1)
    def _():
        x = jnp.maximum(acc_ref[...] + b_ref[...], 0.0)            # (TE, D) f32
        # Contract both operands on their last dim -> no XLU transpose.
        s = jax.lax.dot_general(obj_ref[...].astype(mxu_dtype),
                                x.astype(mxu_dtype),
                                dimension_numbers=(((1,), (1,)), ((), ())),
                                preferred_element_type=jnp.float32)  # (B, TE)
        out_ref[...] = jax.nn.sigmoid(s)


def _score_cached_kernel(x_ref, obj_ref, out_ref, *, mxu_dtype):
    # pred_tile = sigmoid(obj @ x_tile.T) against a precomputed entity table.
    s = jax.lax.dot_general(obj_ref[...].astype(mxu_dtype),
                            x_ref[...].astype(mxu_dtype),
                            dimension_numbers=(((1,), (1,)), ((), ())),
                            preferred_element_type=jnp.float32)
    out_ref[...] = jax.nn.sigmoid(s)


def _score_neg_kernel(obj_ref, neg_ref, out_ref):
    # pred = sigmoid(sum_d obj[b,d] * neg[b,n,d]).  HBM-bound on neg, so use the
    # VPU multiply + last-axis reduce instead of q=1 MXU matmuls.
    obj = obj_ref[...].astype(jnp.float32)
    neg = neg_ref[...].astype(jnp.float32)
    out_ref[...] = jax.nn.sigmoid(jnp.sum(obj[:, None, :] * neg, axis=-1))


# ---------------------------------------------------------------------------
# pallas_call wrappers
# ---------------------------------------------------------------------------
def pallas_encode_rows(emb_rows, w_pad, pca_b_pad, *, mxu_dtype, tile_rows,
                       vmem_limit):
    """relu(rows @ W + b), tiled over rows and K. rows: (R, K_pad) -> (R, D_pad) f32."""
    r, k = emb_rows.shape
    d = w_pad.shape[1]
    tm = min(tile_rows, _round_up(r, 16))
    r_pad = _round_up(r, tm)
    tk = k if k <= 512 else 512
    assert k % tk == 0
    emb_rows = jnp.pad(emb_rows, ((0, r_pad - r), (0, 0)))
    out = pl.pallas_call(
        functools.partial(_encode_rows_kernel, mxu_dtype=mxu_dtype),
        out_shape=jax.ShapeDtypeStruct((r_pad, d), jnp.float32),
        grid=(r_pad // tm, k // tk),
        in_specs=[
            pl.BlockSpec((tm, tk), lambda i, kk: (i, kk)),   # row tile
            pl.BlockSpec((tk, d), lambda i, kk: (kk, 0)),    # W K-tile
            pl.BlockSpec((1, d), lambda i, kk: (0, 0)),      # bias resident
        ],
        out_specs=pl.BlockSpec((tm, d), lambda i, kk: (i, 0)),
        scratch_shapes=[pltpu.VMEM((tm, d), jnp.float32)],
        compiler_params=pltpu.CompilerParams(
            dimension_semantics=("parallel", "arbitrary"),
            vmem_limit_bytes=vmem_limit),
    )(emb_rows, w_pad, pca_b_pad)
    return out[:r]


def pallas_score_all_fused(init_embed_pad, w_pad, pca_b_pad, obj, *, mxu_dtype,
                           tile_ent, vmem_limit):
    """sigmoid(obj @ relu(init_embed @ W + b).T), tiled over entities and K."""
    e_pad, k_pad = init_embed_pad.shape
    d_pad = w_pad.shape[1]
    b_rows = obj.shape[0]
    te = tile_ent
    tk = k_pad if k_pad <= 512 else 512
    assert e_pad % te == 0 and k_pad % tk == 0
    return pl.pallas_call(
        functools.partial(_fused_score_all_kernel, mxu_dtype=mxu_dtype),
        out_shape=jax.ShapeDtypeStruct((b_rows, e_pad), jnp.float32),
        grid=(e_pad // te, k_pad // tk),
        in_specs=[
            pl.BlockSpec((te, tk), lambda i, k: (i, k)),          # entity tile
            pl.BlockSpec((tk, d_pad), lambda i, k: (k, 0)),       # W K-tile
            pl.BlockSpec((1, d_pad), lambda i, k: (0, 0)),        # bias resident
            pl.BlockSpec((b_rows, d_pad), lambda i, k: (0, 0)),   # obj resident
        ],
        out_specs=pl.BlockSpec((b_rows, te), lambda i, k: (0, i)),  # lane-dense
        scratch_shapes=[pltpu.VMEM((te, d_pad), jnp.float32)],
        compiler_params=pltpu.CompilerParams(
            dimension_semantics=("parallel", "arbitrary"),
            vmem_limit_bytes=vmem_limit),
    )(init_embed_pad, w_pad, pca_b_pad, obj)


def pallas_score_all_cached(x_cache, obj, *, mxu_dtype, tile_ent, vmem_limit):
    """sigmoid(obj @ x_cache.T) against a precomputed entity table, entity-tiled."""
    e_pad, d_pad = x_cache.shape
    b_rows = obj.shape[0]
    te = tile_ent
    assert e_pad % te == 0
    return pl.pallas_call(
        functools.partial(_score_cached_kernel, mxu_dtype=mxu_dtype),
        out_shape=jax.ShapeDtypeStruct((b_rows, e_pad), jnp.float32),
        grid=(e_pad // te,),
        in_specs=[
            pl.BlockSpec((te, d_pad), lambda i: (i, 0)),
            pl.BlockSpec((b_rows, d_pad), lambda i: (0, 0)),
        ],
        out_specs=pl.BlockSpec((b_rows, te), lambda i: (0, i)),
        compiler_params=pltpu.CompilerParams(
            dimension_semantics=("parallel",),
            vmem_limit_bytes=vmem_limit),
    )(x_cache, obj)


def pallas_score_neg(obj, neg_obj, *, vmem_limit):
    """sigmoid(sum_d obj * neg), tiled over batch; lane-dense N output."""
    b_pad, d_pad = obj.shape
    n_pad = neg_obj.shape[1]
    tb = _pick_tile_batch(b_pad, n_pad, d_pad, jnp.dtype(neg_obj.dtype).itemsize,
                          vmem_limit)
    return pl.pallas_call(
        _score_neg_kernel,
        out_shape=jax.ShapeDtypeStruct((b_pad, n_pad), jnp.float32),
        grid=(b_pad // tb,),
        in_specs=[
            pl.BlockSpec((tb, d_pad), lambda i: (i, 0)),
            pl.BlockSpec((tb, n_pad, d_pad), lambda i: (i, 0, 0)),
        ],
        out_specs=pl.BlockSpec((tb, n_pad), lambda i: (i, 0)),
        compiler_params=pltpu.CompilerParams(
            dimension_semantics=("parallel",),
            vmem_limit_bytes=vmem_limit),
    )(obj, neg_obj)


# ---------------------------------------------------------------------------
# Model: parameter construction + forward (glue: gathers / padding in JAX)
# ---------------------------------------------------------------------------
class HRANDistMultPallas:
    def __init__(self, num_ent, num_rel, init_dim, gcn_dim, key,
                 mxu_dtype=jnp.bfloat16, tile_ent=None, tile_rows=256):
        self.num_ent = num_ent
        self.mxu_dtype = mxu_dtype
        self.tile_rows = tile_rows
        self.vmem_limit = _vmem_limit_bytes()
        self.x_cache = None

        k0, k1, k2, k3 = jax.random.split(key, 4)
        # get_param -> xavier-style init (deterministic from the provided key)
        self.init_embed = jax.random.normal(k0, (num_ent, init_dim),
                                            jnp.float32) * 0.1
        self.init_rel = jax.random.normal(k1, (num_rel * 2, gcn_dim),
                                          jnp.float32) * 0.1
        # SparseInputLinear.reset_parameters: U(-stdv, stdv), stdv = 1/sqrt(out_dim)
        stdv = 1.0 / jnp.sqrt(jnp.float32(gcn_dim))
        self.pca_w = jax.random.uniform(k2, (init_dim, gcn_dim), jnp.float32,
                                        -stdv, stdv)
        self.pca_b = jax.random.uniform(k3, (1, gcn_dim), jnp.float32,
                                        -stdv, stdv)
        # 'bias' Parameter(num_ent) exists in BaseModel but is unused in forward.
        self.bias = jnp.zeros((num_ent,), jnp.float32)

        # ---- lane/sublane aligned copies consumed by the kernels ----
        self.k_pad = _round_up(init_dim, 128)
        if self.k_pad > 512:                       # K-tiled with tk=512
            self.k_pad = _round_up(self.k_pad, 512)
        self.d_pad = _round_up(gcn_dim, 128)

        mxu_bytes = jnp.dtype(mxu_dtype).itemsize
        if tile_ent is None:
            tile_ent = _pick_tile_ent(self.k_pad, self.d_pad, 128, mxu_bytes,
                                      self.vmem_limit)
        self.te = min(tile_ent, _round_up(num_ent, 128))
        # Even number of entity tiles so the parallel axis splits across 2 TCs.
        self.e_pad = _round_up(num_ent, 2 * self.te)

        # MXU operands stored narrow (bf16 by default); bias stays f32.
        self.w_pad = _pad2d(self.pca_w, self.k_pad, self.d_pad).astype(mxu_dtype)
        self.pca_b_pad = _pad2d(self.pca_b, 1, self.d_pad)
        # feature-padded rows (for row gathers feeding the row encoder)
        self.init_embed_rows_pad = _pad2d(self.init_embed, num_ent,
                                          self.k_pad).astype(mxu_dtype)
        # fully padded (rows + features) entity table for the fused score kernel
        # (padded rows give relu(b) != 0 but are sliced off the returned pred)
        self.init_embed_pad = _pad2d(self.init_embed, self.e_pad,
                                     self.k_pad).astype(mxu_dtype)
        self.init_rel_pad = _pad2d(self.init_rel, num_rel * 2, self.d_pad)  # f32

    def precompute_entity_embeddings(self):
        """Encode the full entity table once (amortized link-prediction eval)."""
        x = pallas_encode_rows(self.init_embed_pad, self.w_pad, self.pca_b_pad,
                               mxu_dtype=self.mxu_dtype,
                               tile_rows=self.tile_rows,
                               vmem_limit=self.vmem_limit)
        self.x_cache = x.astype(self.mxu_dtype)
        return self.x_cache

    def forward(self, sub, rel, neg_ents=None):
        # forward_base (no_enc=False, gcn_layer=0, dropout = identity in eval)
        b = sub.shape[0]
        b_pad = _round_up(max(b, 16), 16)          # 16: bf16 sublane packing
        sub_p = jnp.pad(sub, (0, b_pad - b))
        rel_p = jnp.pad(rel, (0, b_pad - b))
        rel_emb = jnp.take(self.init_rel_pad, rel_p, axis=0)      # (b_pad, D) f32

        if neg_ents is None:
            if self.x_cache is not None:
                sub_emb = jnp.take(self.x_cache, sub_p, axis=0).astype(jnp.float32)
                obj = sub_emb * rel_emb
                pred = pallas_score_all_cached(self.x_cache, obj,
                                               mxu_dtype=self.mxu_dtype,
                                               tile_ent=self.te,
                                               vmem_limit=self.vmem_limit)
            else:
                # Only the gathered rows go through the row encoder; the full x
                # is computed tile-by-tile inside the fused scoring kernel and
                # never written to HBM.
                sub_rows = jnp.take(self.init_embed_rows_pad, sub_p, axis=0)
                sub_emb = pallas_encode_rows(sub_rows, self.w_pad, self.pca_b_pad,
                                             mxu_dtype=self.mxu_dtype,
                                             tile_rows=self.tile_rows,
                                             vmem_limit=self.vmem_limit)
                obj = sub_emb * rel_emb
                pred = pallas_score_all_fused(self.init_embed_pad, self.w_pad,
                                              self.pca_b_pad, obj,
                                              mxu_dtype=self.mxu_dtype,
                                              tile_ent=self.te,
                                              vmem_limit=self.vmem_limit)
            return pred[:b, :self.num_ent]

        n = neg_ents.shape[1]
        n_rows = _round_up(max(n, 8), 8)           # rows to encode
        n_pad = _round_up(max(n, 128), 128)        # lane-dense score output
        neg_p = jnp.pad(neg_ents, ((0, b_pad - b), (0, n_rows - n)))
        # One tiled encoder call covers both sub rows and negative rows.
        rows = jnp.concatenate(
            [jnp.take(self.init_embed_rows_pad, sub_p, axis=0),
             jnp.take(self.init_embed_rows_pad, neg_p.reshape(-1), axis=0)],
            axis=0)
        enc = pallas_encode_rows(rows, self.w_pad, self.pca_b_pad,
                                 mxu_dtype=self.mxu_dtype,
                                 tile_rows=self.tile_rows,
                                 vmem_limit=self.vmem_limit)
        sub_emb = enc[:b_pad]
        neg_obj = enc[b_pad:].reshape(b_pad, n_rows, self.d_pad)
        neg_obj = jnp.pad(neg_obj, ((0, 0), (0, n_pad - n_rows), (0, 0)))
        neg_obj = neg_obj.astype(self.mxu_dtype)   # halve the dominant HBM stream
        obj = sub_emb * rel_emb
        pred = pallas_score_neg(obj, neg_obj, vmem_limit=self.vmem_limit)
        return pred[:b, :n]


# ---------------------------------------------------------------------------
def _reference_forward(model, sub, rel, neg_ents=None):
    x = jnp.maximum(model.init_embed @ model.pca_w + model.pca_b, 0.0)
    sub_emb = x[sub]
    rel_emb = model.init_rel[rel]
    obj = sub_emb * rel_emb
    if neg_ents is None:
        neg = jnp.broadcast_to(x[None], (sub.shape[0],) + x.shape)
    else:
        neg = x[neg_ents]
    return jax.nn.sigmoid(jnp.einsum('bk,bnk->bn', obj, neg))


if __name__ == "__main__":
    num_ent, num_rel = 64, 5
    init_dim, gcn_dim = 16, 32
    batch, n_neg = 4, 8

    key = jax.random.PRNGKey(0)
    kmodel, ksub, krel, kneg = jax.random.split(key, 4)

    sub = jax.random.randint(ksub, (batch,), 0, num_ent, dtype=jnp.int32)
    rel = jax.random.randint(krel, (batch,), 0, num_rel * 2, dtype=jnp.int32)
    neg_ents = jax.random.randint(kneg, (batch, n_neg), 0, num_ent,
                                  dtype=jnp.int32)

    # ---- f32 MXU operands: exact match with the PyTorch-module math ----
    model_f32 = HRANDistMultPallas(num_ent, num_rel, init_dim, gcn_dim, kmodel,
                                   mxu_dtype=jnp.float32)
    pred_all = jax.block_until_ready(model_f32.forward(sub, rel, None))
    pred_neg = jax.block_until_ready(model_f32.forward(sub, rel, neg_ents))
    ref_all = _reference_forward(model_f32, sub, rel, None)
    ref_neg = _reference_forward(model_f32, sub, rel, neg_ents)
    assert pred_all.shape == (batch, num_ent)
    assert pred_neg.shape == (batch, n_neg)
    assert jnp.allclose(pred_all, ref_all, atol=1e-5, rtol=1e-5)
    assert jnp.allclose(pred_neg, ref_neg, atol=1e-5, rtol=1e-5)

    # cached entity-table path (amortized eval over many batches)
    model_f32.precompute_entity_embeddings()
    pred_all_cached = jax.block_until_ready(model_f32.forward(sub, rel, None))
    assert jnp.allclose(pred_all_cached, ref_all, atol=1e-5, rtol=1e-5)

    # ---- bf16 MXU operands (production default): f32 accumulation ----
    model_bf16 = HRANDistMultPallas(num_ent, num_rel, init_dim, gcn_dim, kmodel)
    pb_all = jax.block_until_ready(model_bf16.forward(sub, rel, None))
    pb_neg = jax.block_until_ready(model_bf16.forward(sub, rel, neg_ents))
    assert pb_all.shape == (batch, num_ent) and pb_neg.shape == (batch, n_neg)
    assert jnp.allclose(pb_all, ref_all, atol=2e-2, rtol=2e-2)
    assert jnp.allclose(pb_neg, ref_neg, atol=2e-2, rtol=2e-2)

    print("KERNEL_OK")
</pallas_src>

<mosaic_0001>
module attributes {stable_mosaic.version = 11 : i64} {
  func.func @_encode_rows_kernel(%arg0: i32, %arg1: i32, %arg2: memref<16x128xf32, #tpu.memory_space<vmem>>, %arg3: memref<128x128xf32, #tpu.memory_space<vmem>>, %arg4: memref<1x128xf32, #tpu.memory_space<vmem>>, %arg5: memref<16x128xf32, #tpu.memory_space<vmem>>, %arg6: memref<16x128xf32, #tpu.memory_space<vmem>>) attributes {dimension_semantics = [#tpu.dimension_semantics<parallel>, #tpu.dimension_semantics<arbitrary>], iteration_bounds = array<i64: 1, 1>, scalar_prefetch = 0 : i64, scratch_operands = 1 : i64, tpu.core_type = #tpu.core_type<tc>, window_params = [{transform_indices = @transform_0, window_bounds = array<i64: 16, 128>}, {transform_indices = @transform_1, window_bounds = array<i64: 128, 128>}, {pipeline_mode = #tpu.pipeline_mode<synchronous>, transform_indices = @transform_2, window_bounds = array<i64: 1, 128>}, {transform_indices = @transform_3, window_bounds = array<i64: 16, 128>}]} {
    %c0_i32 = arith.constant 0 : i32
    %0 = arith.cmpi eq, %arg1, %c0_i32 : i32
    %1 = arith.extui %0 : i1 to i32
    %c0_i32_0 = arith.constant 0 : i32
    %2 = arith.cmpi ne, %1, %c0_i32_0 : i32
    scf.if %2 {
      %cst_10 = arith.constant 0.000000e+00 : f32
      %12 = vector.broadcast %cst_10 : f32 to vector<16x128xf32>
      %c0_11 = arith.constant 0 : index
      %c0_12 = arith.constant 0 : index
      %13 = vector.load %arg6[%c0_11, %c0_12] : memref<16x128xf32, #tpu.memory_space<vmem>>, vector<16x128xf32>
      tpu.vector_store %arg6[%c0_11, %c0_12], %12 {strides = array<i32>} : memref<16x128xf32, #tpu.memory_space<vmem>>, vector<16x128xf32>,
    } else {
    }
    %c0 = arith.constant 0 : index
    %c0_1 = arith.constant 0 : index
    %3 = vector.load %arg6[%c0, %c0_1] : memref<16x128xf32, #tpu.memory_space<vmem>>, vector<16x128xf32>
    %c0_2 = arith.constant 0 : index
    %c0_3 = arith.constant 0 : index
    %4 = vector.load %arg2[%c0_2, %c0_3] : memref<16x128xf32, #tpu.memory_space<vmem>>, vector<16x128xf32>
    %c0_4 = arith.constant 0 : index
    %c0_5 = arith.constant 0 : index
    %5 = vector.load %arg3[%c0_4, %c0_5] : memref<128x128xf32, #tpu.memory_space<vmem>>, vector<128x128xf32>
    %cst = arith.constant dense<0.000000e+00> : vector<16x128xf32>
    %6 = tpu.matmul %4, %5, %cst {dimension_numbers = #tpu.dot_dimension_numbers<[1], [0], [0], [1], [0, 0, 1, 1], [], []>} : vector<16x128xf32>, vector<128x128xf32>, vector<16x128xf32> -> vector<16x128xf32>
    %7 = arith.addf %3, %6 : vector<16x128xf32>
    %c0_6 = arith.constant 0 : index
    %c0_7 = arith.constant 0 : index
    %8 = vector.load %arg6[%c0_6, %c0_7] : memref<16x128xf32, #tpu.memory_space<vmem>>, vector<16x128xf32>
    tpu.vector_store %arg6[%c0_6, %c0_7], %7 {strides = array<i32>} : memref<16x128xf32, #tpu.memory_space<vmem>>, vector<16x128xf32>,
    %c0_i32_8 = arith.constant 0 : i32
    %9 = arith.cmpi eq, %arg1, %c0_i32_8 : i32
    %10 = arith.extui %9 : i1 to i32
    %c0_i32_9 = arith.constant 0 : i32
    %11 = arith.cmpi ne, %10, %c0_i32_9 : i32
    scf.if %11 {
      %c0_10 = arith.constant 0 : index
      %c0_11 = arith.constant 0 : index
      %12 = vector.load %arg6[%c0_10, %c0_11] : memref<16x128xf32, #tpu.memory_space<vmem>>, vector<16x128xf32>
      %c0_12 = arith.constant 0 : index
      %c0_13 = arith.constant 0 : index
      %13 = vector.load %arg4[%c0_12, %c0_13] : memref<1x128xf32, #tpu.memory_space<vmem>>, vector<1x128xf32>
      %14 = vector.broadcast %13 : vector<1x128xf32> to vector<16x128xf32>
      %15 = arith.addf %12, %14 : vector<16x128xf32>
      %cst_14 = arith.constant 0.000000e+00 : f32
      %16 = vector.broadcast %cst_14 : f32 to vector<16x128xf32>
      %17 = arith.maximumf %15, %16 : vector<16x128xf32>
      %c0_15 = arith.constant 0 : index
      %c0_16 = arith.constant 0 : index
      %18 = vector.load %arg5[%c0_15, %c0_16] : memref<16x128xf32, #tpu.memory_space<vmem>>, vector<16x128xf32>
      tpu.vector_store %arg5[%c0_15, %c0_16], %17 {strides = array<i32>} : memref<16x128xf32, #tpu.memory_space<vmem>>, vector<16x128xf32>,
    } else {
    }
    return
  }
  func.func @transform_0(%arg0: i32, %arg1: i32) -> (i32, i32) {
    %c0_i32 = arith.constant 0 : i32
    return %arg0, %arg1 : i32, i32
  }
  func.func @transform_1(%arg0: i32, %arg1: i32) -> (i32, i32) {
    %c0_i32 = arith.constant 0 : i32
    %c0_i32_0 = arith.constant 0 : i32
    return %arg1, %c0_i32 : i32, i32
  }
  func.func @transform_2(%arg0: i32, %arg1: i32) -> (i32, i32) {
    %c0_i32 = arith.constant 0 : i32
    %c0_i32_0 = arith.constant 0 : i32
    %c0_i32_1 = arith.constant 0 : i32
    return %c0_i32, %c0_i32_0 : i32, i32
  }
  func.func @transform_3(%arg0: i32, %arg1: i32) -> (i32, i32) {
    %c0_i32 = arith.constant 0 : i32
    %c0_i32_0 = arith.constant 0 : i32
    return %arg0, %c0_i32 : i32, i32
  }
}

</mosaic_0001>

<llo_original>
// kernel: tpu_custom_call.1
$region0: #{tpu_custom_call.1}
  #allocation0 [shape = 'u32[]', space=smem, size = 0x4, offset = 0x4, fixed_abs, tag = 'smem constant byte address 0x4 - core index']
  #allocation1 [shape = 'u32[144,128]{1,0:T(1,128)}', space=vmem, size = 0x12000, scoped, tag = 'internal scratch']
  #allocation2 [shape = 'f32[16,128]{1,0:T(8,128)}', space=vmem, size = 0x2000, scoped, tag = 'scratch operand']
  %s0 = inlined_call_operand.hbm [shape: f32[16,128], index: 0, kind: input, shape index: {}]
  %s1 = inlined_call_operand.hbm [shape: f32[128,128], index: 1, kind: input, shape index: {}]
  %s2 = inlined_call_operand.vmem [shape: f32[1,128], index: 2, kind: input, shape index: {}]
  %s3 = inlined_call_operand.hbm [shape: f32[16,128], index: 3, kind: output, shape index: {}]
  %s4 = sld [smem:[#allocation0]]
  $region38: #{tpu_custom_call.1} parent=0
    _
  %s6 = ssub.s32 1, %s4
  %s7 = scalar_select 0, %s6, %s4
  $region1: #{tpu_custom_call.1} parent=0
    #allocation3 [shape = 'u8[8192]{0}', space=vmem, size = 0x2000, scoped, tag = 'input window, operand 0, single buffered']
    #allocation4 [shape = 's32[1]{0}', space=sflag, size = 0x4, scoped, tag = 'scoped memory for tpu_custom_call.1']
    #allocation5 [shape = 's32[1]{0}', space=sflag, size = 0x4, scoped, tag = 'scoped memory for tpu_custom_call.1']
    #allocation6 [shape = 'u8[65536]{0}', space=vmem, size = 0x10000, scoped, tag = 'input window, operand 1, single buffered']
    #allocation7 [shape = 's32[1]{0}', space=sflag, size = 0x4, scoped, tag = 'scoped memory for tpu_custom_call.1']
    #allocation8 [shape = 'u8[8192]{0}', space=vmem, size = 0x2000, scoped, tag = 'output window, operand 0, single buffered']
    %8 = vsyncpa [#allocation4], 0
    %9 = vsyncpa [#allocation7], 0
    %10 = vsyncpa [#allocation5], 0
    // Predicated region
    $region2: #{tpu_custom_call.1} parent=1 // pred_check
      _
    $region3: #{tpu_custom_call.1} parent=1 // pred_check_branch
      %12 = sbr.rel (0) target = $region5
    $region4: #{tpu_custom_call.1} parent=1 // pred_region
      %s14 = ssub.s32 256, 256
      %15 = vsyncadd [#allocation4], %s14
      %s16 = sshll.u32 [#allocation3], 4
      %s17 = int_to_ptr.vmem [resolvable:$true] %s16
      %22 = dma.hbm_to_vmem [thread:$0]  %s0, 256, %s17, [#allocation4], 128, 128, 8
    $region5: #{tpu_custom_call.1} parent=1 // pred_fallthru
      _
    // Predicated region
    $region6: #{tpu_custom_call.1} parent=1 // pred_check
      _
    $region7: #{tpu_custom_call.1} parent=1 // pred_check_branch
      %24 = sbr.rel (0) target = $region9
    $region8: #{tpu_custom_call.1} parent=1 // pred_region
      %s26 = ssub.s32 2048, 2048
      %27 = vsyncadd [#allocation7], %s26
      %s28 = sshll.u32 [#allocation6], 4
      %s29 = int_to_ptr.vmem [resolvable:$true] %s28
      %34 = dma.hbm_to_vmem [thread:$0]  %s1, 2048, %s29, [#allocation7], 128, 128, 8
    $region9: #{tpu_custom_call.1} parent=1 // pred_fallthru
      _
    // Predicated region
    $region10: #{tpu_custom_call.1} parent=1 // pred_check
      _
    $region11: #{tpu_custom_call.1} parent=1 // pred_check_branch
      %36 = sbr.rel (0) target = $region13
    $region12: #{tpu_custom_call.1} parent=1 // pred_region
      _
    $region13: #{tpu_custom_call.1} parent=1 // pred_fallthru
      _
    // Predicated region
    $region14: #{tpu_custom_call.1} parent=1 // pred_check
      _
    $region15: #{tpu_custom_call.1} parent=1 // pred_check_branch
      %38 = sbr.rel (0) target = $region17
    $region16: #{tpu_custom_call.1} parent=1 // pred_region
      %39 = dma.done [#allocation4], 256
    $region17: #{tpu_custom_call.1} parent=1 // pred_fallthru
      _
    // Predicated region
    $region18: #{tpu_custom_call.1} parent=1 // pred_check
      _
    $region19: #{tpu_custom_call.1} parent=1 // pred_check_branch
      %41 = sbr.rel (0) target = $region21
    $region20: #{tpu_custom_call.1} parent=1 // pred_region
      %42 = dma.done [#allocation7], 2048
    $region21: #{tpu_custom_call.1} parent=1 // pred_fallthru
      _
    %p43 = scmp.eq.s32.totalorder 0, 0
    // Predicated region
    $region22: #{tpu_custom_call.1} parent=1 // pred_check
      %p44 = pneg %p43
    $region23: #{tpu_custom_call.1} parent=1 // pred_check_branch
      %46 = sbr.rel (%p44) target = $region25
    $region24: #{tpu_custom_call.1} parent=1 // pred_region
      %47 = vst [vmem:[#allocation2] sm:$0xff] 0.0
      %48 = vst [vmem:[#allocation2 + $0x8] sm:$0xff] 0.0
    $region25: #{tpu_custom_call.1} parent=1 // pred_fallthru
      _
    %v49 = vld [vmem:[#allocation2] sm:$0xff]
    %v50 = vld [vmem:[#allocation2 + $0x8] sm:$0xff]
    %v51 = vld [vmem:[#allocation3] sm:$0xff]
    %v52 = vld [vmem:[#allocation3 + $0x8] sm:$0xff]
    %v53 = vld [vmem:[#allocation6] sm:$0xff]
    %v54 = vld [vmem:[#allocation6 + $0x8] sm:$0xff]
    %v55 = vld [vmem:[#allocation6 + $0x10] sm:$0xff]
    %v56 = vld [vmem:[#allocation6 + $0x18] sm:$0xff]
    %v57 = vld [vmem:[#allocation6 + $0x20] sm:$0xff]
    %v58 = vld [vmem:[#allocation6 + $0x28] sm:$0xff]
    %v59 = vld [vmem:[#allocation6 + $0x30] sm:$0xff]
    %v60 = vld [vmem:[#allocation6 + $0x38] sm:$0xff]
    %v61 = vld [vmem:[#allocation6 + $0x40] sm:$0xff]
    %v62 = vld [vmem:[#allocation6 + $0x48] sm:$0xff]
    %v63 = vld [vmem:[#allocation6 + $0x50] sm:$0xff]
    %v64 = vld [vmem:[#allocation6 + $0x58] sm:$0xff]
    %v65 = vld [vmem:[#allocation6 + $0x60] sm:$0xff]
    %v66 = vld [vmem:[#allocation6 + $0x68] sm:$0xff]
    %v67 = vld [vmem:[#allocation6 + $0x70] sm:$0xff]
    %v68 = vld [vmem:[#allocation6 + $0x78] sm:$0xff]
    %69 = vmatprep.subr.mxu0 0.0
    %70 = vmatpush1.msra.mxu0 %v53
    %71 = vmatprep.subr.mxu0 0.0
    %72 = vmatpush1.msra.mxu0 %v54
    %73 = vmatprep.subr.mxu0 0.0
    %74 = vmatpush1.msra.mxu0 %v55
    %75 = vmatprep.subr.mxu0 0.0
    %76 = vmatpush1.msra.mxu0 %v56
    %77 = vmatprep.subr.mxu0 0.0
    %78 = vmatpush1.msra.mxu0 %v57
    %79 = vmatprep.subr.mxu0 0.0
    %80 = vmatpush1.msra.mxu0 %v58
    %81 = vmatprep.subr.mxu0 0.0
    %82 = vmatpush1.msra.mxu0 %v59
    %83 = vmatprep.subr.mxu0 0.0
    %84 = vmatpush1.msra.mxu0 %v60
    %85 = vmatprep.subr.mxu0 0.0
    %86 = vmatpush1.msra.mxu0 %v61
    %87 = vmatprep.subr.mxu0 0.0
    %88 = vmatpush1.msra.mxu0 %v62
    %89 = vmatprep.subr.mxu0 0.0
    %90 = vmatpush1.msra.mxu0 %v63
    %91 = vmatprep.subr.mxu0 0.0
    %92 = vmatpush1.msra.mxu0 %v64
    %93 = vmatprep.subr.mxu0 0.0
    %94 = vmatpush1.msra.mxu0 %v65
    %95 = vmatprep.subr.mxu0 0.0
    %96 = vmatpush1.msra.mxu0 %v66
    %97 = vmatprep.subr.mxu0 0.0
    %98 = vmatpush1.msra.mxu0 %v67
    %99 = vmatprep.subr.mxu0 0.0
    %100 = vmatpush1.msra.mxu0 %v68
    %101 = vmatprep.subr.mxu0 0.0
    %102 = vmatpush1.msra.mxu0 0.0
    %103 = vmatprep.subr.mxu0 0.0
    %104 = vmatpush1.msra.mxu0 0.0
    %105 = vmatprep.subr.mxu0 0.0
    %106 = vmatpush1.msra.mxu0 0.0
    %107 = vmatprep.subr.mxu0 0.0
    %108 = vmatpush1.msra.mxu0 0.0
    %109 = vmatprep.subr.mxu0 0.0
    %110 = vmatpush1.msra.mxu0 0.0
    %111 = vmatprep.subr.mxu0 0.0
    %112 = vmatpush1.msra.mxu0 0.0
    %113 = vmatprep.subr.mxu0 0.0
    %114 = vmatpush1.msra.mxu0 0.0
    %115 = vmatprep.subr.mxu0 0.0
    %116 = vmatpush1.msra.mxu0 0.0
    %117 = vmatprep.subr.mxu0 0.0
    %118 = vmatpush1.msra.mxu0 0.0
    %119 = vmatprep.subr.mxu0 0.0
    %120 = vmatpush1.msra.mxu0 0.0
    %121 = vmatprep.subr.mxu0 0.0
    %122 = vmatpush1.msra.mxu0 0.0
    %123 = vmatprep.subr.mxu0 0.0
    %124 = vmatpush1.msra.mxu0 0.0
    %125 = vmatprep.subr.mxu0 0.0
    %126 = vmatpush1.msra.mxu0 0.0
    %127 = vmatprep.subr.mxu0 0.0
    %128 = vmatpush1.msra.mxu0 0.0
    %129 = vmatprep.subr.mxu0 0.0
    %130 = vmatpush1.msra.mxu0 0.0
    %131 = vmatprep.subr.mxu0 0.0
    %132 = vmatpush1.msra.mxu0 0.0
    %133 = vmatprep.mubr.f32.mxu0 0.0
    %134 = vmatmul.mubr.f32.gmra.mrb[0].mxu0 %v51
    %v135 = vpop.f32.mrb[0].mxu0
    %v136 = vadd.f32 0.0, %v135
    %v137 = vpop.f32.mrb[0].mxu0
    %138 = vmatprep.mubr.f32.mxu0 0.0
    %139 = vmatmul.mubr.f32.gmra.mrb[0].mxu0 %v52
    %v140 = vpop.f32.mrb[0].mxu0
    %v141 = vadd.f32 0.0, %v140
    %v142 = vpop.f32.mrb[0].mxu0
    %143 = vdwg.mxu0
    %v144 = vadd.f32 %v49, %v136
    %v145 = vadd.f32 %v50, %v141
    %146 = vst [vmem:[#allocation2] sm:$0xff] %v144
    %147 = vst [vmem:[#allocation2 + $0x8] sm:$0xff] %v145
    // Predicated region
    $region26: #{tpu_custom_call.1} parent=1 // pred_check
      %p148 = pneg %p43
    $region27: #{tpu_custom_call.1} parent=1 // pred_check_branch
      %150 = sbr.rel (%p148) target = $region29
    $region28: #{tpu_custom_call.1} parent=1 // pred_region
      %v151 = vld [vmem:[#allocation2] sm:$0xff]
      %v152 = vld [vmem:[#allocation2 + $0x8] sm:$0xff]
      %v153 = vld [vmem:[%s2] sm:$0x1]
      %v155 = vlaneseq
      %v156 = vshrl.u32 %v155, 7
      %v157 = vsub.s32 0, %v156
      %v158 = vrot.slane %v153, %v157
      %v160 = vadd.f32 %v151, %v158
      %v161 = vadd.f32 %v152, %v158
      %v162 = vmax.f32 %v160, 0.0
      %v163 = vmax.f32 %v161, 0.0
      %164 = vst [vmem:[#allocation8] sm:$0xff] %v162
      %165 = vst [vmem:[#allocation8 + $0x8] sm:$0xff] %v163
    $region29: #{tpu_custom_call.1} parent=1 // pred_fallthru
      _
    // Predicated region
    $region30: #{tpu_custom_call.1} parent=1 // pred_check
      _
    $region31: #{tpu_custom_call.1} parent=1 // pred_check_branch
      %167 = sbr.rel (0) target = $region33
    $region32: #{tpu_custom_call.1} parent=1 // pred_region
      %s169 = ssub.s32 256, 256
      %170 = vsyncadd [#allocation5], %s169
      %s171 = sshll.u32 [#allocation8], 4
      %s172 = int_to_ptr.vmem [resolvable:$true] %s171
      %177 = dma.vmem_to_hbm [thread:$0]  %s172, 256, %s3, [#allocation5], 128, 128, 8
    $region33: #{tpu_custom_call.1} parent=1 // pred_fallthru
      _
    // Predicated region
    $region34: #{tpu_custom_call.1} parent=1 // pred_check
      _
    $region35: #{tpu_custom_call.1} parent=1 // pred_check_branch
      %179 = sbr.rel (0) target = $region37
    $region36: #{tpu_custom_call.1} parent=1 // pred_region
      %180 = dma.done [#allocation5], 256
    $region37: #{tpu_custom_call.1} parent=1 // pred_fallthru
      _
    %181 = vsyncpa [#allocation4], 1
    %182 = vsyncpa [#allocation7], 1
    %183 = vsyncpa [#allocation5], 1

</llo_original>
